<compile_context>
chip_gen: v6e
topology: v6e:2x2x1
jax: 0.10.0
libtpu: 0.0.40
codegen_flags: <defaults>
</compile_context>

<pallas_src>
import math
import functools

import jax
import jax.numpy as jnp
from jax.experimental import pallas as pl
from jax.experimental.pallas import tpu as pltpu


def _round_up(n, mult):
    return ((n + mult - 1) // mult) * mult


def arcface_kernel(xn_ref, w_ref, l_ref, out_ref, *,
                   s, cos_m, sin_m, th, mm, eps, block_c):
    # xn: (b_pad, d_pad) bf16, already L2-normalized (resident, constant index_map).
    # w : (block_c, d_pad) bf16, already L2-normalized (streamed class tile).
    # cos = xn @ w^T without materializing a transpose: contract the last dims.
    cos = jax.lax.dot_general(
        xn_ref[...], w_ref[...],
        dimension_numbers=(((1,), (1,)), ((), ())),
        preferred_element_type=jnp.float32)           # (b_pad, block_c) f32

    # ArcFace margin, all in f32 (v5e has no bf16 VPU/EUP path).
    # Clamp 1 - cos^2 at 0 so bf16 rounding can't make sqrt go NaN.
    sin = jnp.sqrt(jnp.maximum(1.0 - cos * cos, 0.0) + eps)
    phi = cos * cos_m - sin * sin_m
    phi = jnp.where(cos > th, phi, cos - mm)

    # One-hot blend as a select on the *global* class index
    # (local lane index + tile offset).  Replaces torch scatter_.
    col = (jax.lax.broadcasted_iota(jnp.int32, cos.shape, 1)
           + pl.program_id(0) * block_c)
    out_ref[...] = (jnp.where(col == l_ref[...], phi, cos) * s).astype(out_ref.dtype)


def arcface_forward(x, weight, labels, *, s=30.0, m=0.5,
                    block_c=None, target_tile_bytes=2 << 20,
                    vmem_budget_bytes=24 << 20, weight_buffers=2,
                    mxu_dtype=jnp.bfloat16):
    B, D = x.shape
    C, D2 = weight.shape
    assert D == D2
    x = x.astype(jnp.float32)
    w = weight.astype(jnp.float32)
    itemsize = jnp.dtype(mxu_dtype).itemsize

    # Hoist BOTH normalizations out of the kernel (each computed exactly once,
    # not once per class tile) and ship bf16 to the MXU.
    # F.normalize(v, dim=1) == v * rsqrt(max(||v||^2, 1e-24)) == v / max(||v||, 1e-12)
    xn = x * jax.lax.rsqrt(jnp.maximum(jnp.sum(x * x, -1, keepdims=True), 1e-24))
    wn = w * jax.lax.rsqrt(jnp.maximum(jnp.sum(w * w, -1, keepdims=True), 1e-24))
    xn = xn.astype(mxu_dtype)
    wn = wn.astype(mxu_dtype)

    # Padding.  Features: only pad to a lane multiple when D > 128; for small D
    # the block's last dim equals the full array dim (legal) and we avoid 4x
    # extra HBM traffic on the dominant weight stream.  Zero padding is exact.
    d_pad = D if D <= 128 else _round_up(D, 128)
    b_pad = _round_up(max(B, 8), 8)
    c_full = _round_up(max(C, 128), 128)

    if block_c is None:
        # Byte-target tile sizing: >= ~2 MiB of streamed weights per grid step.
        block_c = _round_up(max(target_tile_bytes // (d_pad * itemsize), 128), 128)
        block_c = min(block_c, c_full)
        # On big class counts keep >= 2 tiles so the 'parallel' class axis can
        # still split across v7x's two TensorCores.
        if c_full >= 4096 and block_c > c_full // 2:
            block_c = _round_up(pl.cdiv(c_full, 2), 128)
    else:
        block_c = min(_round_up(block_c, 128), c_full)

    # Explicit VMEM budget (double-buffered weights + output, resident xn, labels).
    def vmem_need(bc):
        return (weight_buffers * bc * d_pad * itemsize   # streamed weight tiles
                + 2 * b_pad * bc * 4                     # output tiles (f32)
                + 2 * b_pad * d_pad * itemsize           # resident xn (bf16)
                + 2 * b_pad * 128 * 4)                   # labels (lane-padded)

    while vmem_need(block_c) > vmem_budget_bytes and block_c > 128:
        block_c = max(128, _round_up(block_c // 2, 128))

    c_pad = _round_up(c_full, block_c)
    n_ctiles = c_pad // block_c

    x_p = jnp.zeros((b_pad, d_pad), mxu_dtype).at[:B, :D].set(xn)
    w_p = jnp.zeros((c_pad, d_pad), mxu_dtype).at[:C, :D].set(wn)
    # Labels are assumed valid in [0, C); padded rows use -1 (never matches iota).
    l_p = jnp.full((b_pad, 1), -1, jnp.int32).at[:B, 0].set(labels.astype(jnp.int32))

    kernel = functools.partial(
        arcface_kernel,
        s=float(s), cos_m=math.cos(m), sin_m=math.sin(m),
        th=math.cos(math.pi - m), mm=math.sin(math.pi - m) * m,
        eps=1e-07, block_c=block_c)

    # Raise the scoped VMEM limit to cover the budget (v5e default is 16 MiB),
    # while staying comfortably under v7x's 64 MiB physical VMEM per core.
    vmem_limit = int(max(32 << 20, min(vmem_need(block_c) + (8 << 20), 48 << 20)))

    w_spec_kwargs = {}
    if weight_buffers != 2:
        # Optional deeper pipeline on the only large streamed operand.
        w_spec_kwargs["pipeline_mode"] = pl.Buffered(weight_buffers)

    bytes_accessed = (x_p.size * itemsize + w_p.size * itemsize
                      + l_p.size * 4 + b_pad * c_pad * 4)

    out = pl.pallas_call(
        kernel,
        out_shape=jax.ShapeDtypeStruct((b_pad, c_pad), jnp.float32),
        grid=(n_ctiles,),
        in_specs=[
            pl.BlockSpec((b_pad, d_pad), lambda j: (0, 0)),     # xn: resident
            pl.BlockSpec((block_c, d_pad), lambda j: (j, 0),    # weights: streamed
                         **w_spec_kwargs),
            pl.BlockSpec((b_pad, 1), lambda j: (0, 0)),         # labels: resident
        ],
        out_specs=pl.BlockSpec((b_pad, block_c), lambda j: (0, j)),
        compiler_params=pltpu.CompilerParams(
            dimension_semantics=("parallel",),                  # megacore on v7x
            vmem_limit_bytes=vmem_limit),
        cost_estimate=pl.CostEstimate(
            flops=2 * b_pad * c_pad * d_pad,
            transcendentals=b_pad * c_pad,
            bytes_accessed=bytes_accessed),
    )(x_p, w_p, l_p)

    return out[:B, :C]


def xavier_uniform(key, out_features, in_features):
    # nn.init.xavier_uniform_: U(-a, a), a = sqrt(6 / (fan_in + fan_out))
    a = math.sqrt(6.0 / (in_features + out_features))
    return jax.random.uniform(
        key, (out_features, in_features), dtype=jnp.float32, minval=-a, maxval=a)


def _ref_matched(x, w, l, s=30.0, m=0.5):
    """Pure-JAX reference using the same bf16 MXU feed + clamp as the kernel."""
    xn = x * jax.lax.rsqrt(jnp.maximum(jnp.sum(x * x, -1, keepdims=True), 1e-24))
    wn = w * jax.lax.rsqrt(jnp.maximum(jnp.sum(w * w, -1, keepdims=True), 1e-24))
    c = jnp.dot(xn.astype(jnp.bfloat16), wn.astype(jnp.bfloat16).T,
                preferred_element_type=jnp.float32)
    sn = jnp.sqrt(jnp.maximum(1.0 - c * c, 0.0) + 1e-07)
    p = c * math.cos(m) - sn * math.sin(m)
    p = jnp.where(c > math.cos(math.pi - m), p, c - math.sin(math.pi - m) * m)
    o = jax.nn.one_hot(l, w.shape[0], dtype=jnp.float32)
    return (o * p + (1.0 - o) * c) * s


def _ref_f32(x, w, l, s=30.0, m=0.5):
    """Full-precision reference matching the PyTorch module exactly."""
    xn = x / jnp.maximum(jnp.linalg.norm(x, axis=1, keepdims=True), 1e-12)
    wn = w / jnp.maximum(jnp.linalg.norm(w, axis=1, keepdims=True), 1e-12)
    c = xn @ wn.T
    sn = jnp.sqrt(1.0 - c ** 2 + 1e-07)
    p = c * math.cos(m) - sn * math.sin(m)
    p = jnp.where(c > math.cos(math.pi - m), p, c - math.sin(math.pi - m) * m)
    o = jax.nn.one_hot(l, w.shape[0], dtype=jnp.float32)
    return (o * p + (1.0 - o) * c) * s


def _run_case(batch, in_features, out_features, block_c, key):
    kx, kw, kl = jax.random.split(key, 3)
    x = jax.random.normal(kx, (batch, in_features), dtype=jnp.float32)
    w = xavier_uniform(kw, out_features, in_features)
    l = jax.random.randint(kl, (batch,), 0, out_features, dtype=jnp.int32)

    out = jax.block_until_ready(
        arcface_forward(x, w, l, s=30.0, m=0.5, block_c=block_c))

    assert out.shape == (batch, out_features)
    assert not bool(jnp.any(jnp.isnan(out)))
    # Tight-ish check vs a reference that mirrors the kernel's bf16 MXU feed.
    assert jnp.allclose(out, _ref_matched(x, w, l), atol=5e-2, rtol=2e-2), \
        "mismatch vs matched (bf16-feed) reference"
    # Loose check vs the exact f32 PyTorch-equivalent (bf16 feed costs ~3 digits).
    assert jnp.allclose(out, _ref_f32(x, w, l), atol=0.35), \
        "mismatch vs f32 reference"


if __name__ == "__main__":
    key = jax.random.PRNGKey(0)
    k1, k2, k3 = jax.random.split(key, 3)

    # Small shape consistent with the module; exercises the unpadded D<128 path.
    _run_case(batch=8, in_features=32, out_features=16, block_c=None, key=k1)
    # Explicit small tile override -> 4-step grid; exercises the class tiling,
    # the global-iota label select across tiles, and C padding.
    _run_case(batch=8, in_features=512, out_features=1000, block_c=256, key=k2)
    # Odd batch / non-multiple-of-128 D with auto tile sizing (padding paths).
    _run_case(batch=5, in_features=200, out_features=1000, block_c=None, key=k3)

    print("KERNEL_OK")
</pallas_src>

<mosaic_0001>
module attributes {stable_mosaic.version = 11 : i64} {
  func.func @arcface_kernel(%arg0: i32, %arg1: memref<8x32xbf16, #tpu.memory_space<vmem>>, %arg2: memref<128x32xbf16, #tpu.memory_space<vmem>>, %arg3: memref<8x1xi32, #tpu.memory_space<vmem>>, %arg4: memref<8x128xf32, #tpu.memory_space<vmem>>) attributes {dimension_semantics = [#tpu.dimension_semantics<parallel>], iteration_bounds = array<i64: 1>, scalar_prefetch = 0 : i64, scratch_operands = 0 : i64, tpu.core_type = #tpu.core_type<tc>, window_params = [{pipeline_mode = #tpu.pipeline_mode<synchronous>, transform_indices = @transform_0, window_bounds = array<i64: 8, 32>}, {transform_indices = @transform_1, window_bounds = array<i64: 128, 32>}, {pipeline_mode = #tpu.pipeline_mode<synchronous>, transform_indices = @transform_2, window_bounds = array<i64: 8, 1>}, {transform_indices = @transform_3, window_bounds = array<i64: 8, 128>}]} {
    %c0 = arith.constant 0 : index
    %c0_0 = arith.constant 0 : index
    %0 = vector.load %arg1[%c0, %c0_0] : memref<8x32xbf16, #tpu.memory_space<vmem>>, vector<8x32xbf16>
    %c0_1 = arith.constant 0 : index
    %c0_2 = arith.constant 0 : index
    %1 = vector.load %arg2[%c0_1, %c0_2] : memref<128x32xbf16, #tpu.memory_space<vmem>>, vector<128x32xbf16>
    %cst = arith.constant dense<0.000000e+00> : vector<8x128xf32>
    %2 = tpu.matmul %0, %1, %cst {dimension_numbers = #tpu.dot_dimension_numbers<[1], [1], [0], [0], [0, 0, 1, 0], [], []>} : vector<8x32xbf16>, vector<128x32xbf16>, vector<8x128xf32> -> vector<8x128xf32>
    %3 = arith.mulf %2, %2 : vector<8x128xf32>
    %cst_3 = arith.constant 1.000000e+00 : f32
    %4 = vector.broadcast %cst_3 : f32 to vector<8x128xf32>
    %5 = arith.subf %4, %3 : vector<8x128xf32>
    %cst_4 = arith.constant 0.000000e+00 : f32
    %6 = vector.broadcast %cst_4 : f32 to vector<8x128xf32>
    %7 = arith.maximumf %5, %6 : vector<8x128xf32>
    %cst_5 = arith.constant 1.000000e-07 : f32
    %8 = vector.broadcast %cst_5 : f32 to vector<8x128xf32>
    %9 = arith.addf %7, %8 : vector<8x128xf32>
    %10 = math.sqrt %9 : vector<8x128xf32>
    %cst_6 = arith.constant 0.87758255 : f32
    %11 = vector.broadcast %cst_6 : f32 to vector<8x128xf32>
    %12 = arith.mulf %2, %11 : vector<8x128xf32>
    %cst_7 = arith.constant 0.47942555 : f32
    %13 = vector.broadcast %cst_7 : f32 to vector<8x128xf32>
    %14 = arith.mulf %10, %13 : vector<8x128xf32>
    %15 = arith.subf %12, %14 : vector<8x128xf32>
    %cst_8 = arith.constant -0.87758255 : f32
    %16 = vector.broadcast %cst_8 : f32 to vector<8x128xf32>
    %17 = arith.cmpf ogt, %2, %16 : vector<8x128xf32>
    %cst_9 = arith.constant 0.239712775 : f32
    %18 = vector.broadcast %cst_9 : f32 to vector<8x128xf32>
    %19 = arith.subf %2, %18 : vector<8x128xf32>
    %20 = arith.select %17, %15, %19 : vector<8x128xi1>, vector<8x128xf32>
    %21 = tpu.iota {dimensions = array<i32: 1>} : vector<8x128xi32>
    %c128_i32 = arith.constant 128 : i32
    %22 = arith.muli %arg0, %c128_i32 : i32
    %23 = vector.broadcast %22 : i32 to vector<8x128xi32>
    %24 = arith.addi %21, %23 : vector<8x128xi32>
    %c0_10 = arith.constant 0 : index
    %c0_11 = arith.constant 0 : index
    %25 = vector.load %arg3[%c0_10, %c0_11] : memref<8x1xi32, #tpu.memory_space<vmem>>, vector<8x1xi32>
    %26 = vector.broadcast %25 : vector<8x1xi32> to vector<8x128xi32>
    %27 = arith.cmpi eq, %24, %26 : vector<8x128xi32>
    %28 = arith.select %27, %20, %2 : vector<8x128xi1>, vector<8x128xf32>
    %cst_12 = arith.constant 3.000000e+01 : f32
    %29 = vector.broadcast %cst_12 : f32 to vector<8x128xf32>
    %30 = arith.mulf %28, %29 : vector<8x128xf32>
    %c0_13 = arith.constant 0 : index
    %c0_14 = arith.constant 0 : index
    %31 = vector.load %arg4[%c0_13, %c0_14] : memref<8x128xf32, #tpu.memory_space<vmem>>, vector<8x128xf32>
    tpu.vector_store %arg4[%c0_13, %c0_14], %30 {strides = array<i32>} : memref<8x128xf32, #tpu.memory_space<vmem>>, vector<8x128xf32>,
    return
  }
  func.func @transform_0(%arg0: i32) -> (i32, i32) {
    %c0_i32 = arith.constant 0 : i32
    %c0_i32_0 = arith.constant 0 : i32
    %c0_i32_1 = arith.constant 0 : i32
    return %c0_i32, %c0_i32_0 : i32, i32
  }
  func.func @transform_1(%arg0: i32) -> (i32, i32) {
    %c0_i32 = arith.constant 0 : i32
    %c0_i32_0 = arith.constant 0 : i32
    return %arg0, %c0_i32 : i32, i32
  }
  func.func @transform_2(%arg0: i32) -> (i32, i32) {
    %c0_i32 = arith.constant 0 : i32
    %c0_i32_0 = arith.constant 0 : i32
    %c0_i32_1 = arith.constant 0 : i32
    return %c0_i32, %c0_i32_0 : i32, i32
  }
  func.func @transform_3(%arg0: i32) -> (i32, i32) {
    %c0_i32 = arith.constant 0 : i32
    %c0_i32_0 = arith.constant 0 : i32
    return %c0_i32, %arg0 : i32, i32
  }
}

</mosaic_0001>

<llo_original>
// kernel: tpu_custom_call.1
$region0: #{tpu_custom_call.1}
  #allocation0 [shape = 'u32[]', space=smem, size = 0x4, offset = 0x4, fixed_abs, tag = 'smem constant byte address 0x4 - core index']
  #allocation1 [shape = 'u32[144,128]{1,0:T(1,128)}', space=vmem, size = 0x12000, scoped, tag = 'internal scratch']
  %s0 = inlined_call_operand.vmem [shape: bf16[8,32], index: 0, kind: input, shape index: {}]
  %s1 = inlined_call_operand.vmem [shape: bf16[128,32], index: 1, kind: input, shape index: {}]
  %s2 = inlined_call_operand.vmem [shape: s32[8,1], index: 2, kind: input, shape index: {}]
  %s3 = inlined_call_operand.hbm [shape: f32[8,128], index: 3, kind: output, shape index: {}]
  %s4 = sld [smem:[#allocation0]]
  $region22: #{tpu_custom_call.1} parent=0
    _
  %s6 = ssub.s32 1, %s4
  %s7 = scalar_select 0, %s6, %s4
  $region1: #{tpu_custom_call.1} parent=0
    #allocation2 [shape = 'u8[4096]{0}', space=vmem, size = 0x1000, scoped, tag = 'output window, operand 0, single buffered']
    #allocation3 [shape = 's32[1]{0}', space=sflag, size = 0x4, scoped, tag = 'scoped memory for tpu_custom_call.1']
    %8 = vsyncpa [#allocation3], 0
    // Predicated region
    $region2: #{tpu_custom_call.1} parent=1 // pred_check
      _
    $region3: #{tpu_custom_call.1} parent=1 // pred_check_branch
      %10 = sbr.rel (0) target = $region5
    $region4: #{tpu_custom_call.1} parent=1 // pred_region
      _
    $region5: #{tpu_custom_call.1} parent=1 // pred_fallthru
      _
    // Predicated region
    $region6: #{tpu_custom_call.1} parent=1 // pred_check
      _
    $region7: #{tpu_custom_call.1} parent=1 // pred_check_branch
      %12 = sbr.rel (0) target = $region9
    $region8: #{tpu_custom_call.1} parent=1 // pred_region
      _
    $region9: #{tpu_custom_call.1} parent=1 // pred_fallthru
      _
    // Predicated region
    $region10: #{tpu_custom_call.1} parent=1 // pred_check
      _
    $region11: #{tpu_custom_call.1} parent=1 // pred_check_branch
      %14 = sbr.rel (0) target = $region13
    $region12: #{tpu_custom_call.1} parent=1 // pred_region
      _
    $region13: #{tpu_custom_call.1} parent=1 // pred_fallthru
      _
    %v16 = vld [vmem:[%s0] sm:$0xf]
    %v17 = vld [vmem:[%s1] sm:$0xf]
    %v18 = vld [vmem:[%s1 + $0x4] sm:$0xf]
    %v19 = vld [vmem:[%s1 + $0x8] sm:$0xf]
    %v20 = vld [vmem:[%s1 + $0xc] sm:$0xf]
    %v21 = vld [vmem:[%s1 + $0x10] sm:$0xf]
    %v22 = vld [vmem:[%s1 + $0x14] sm:$0xf]
    %v23 = vld [vmem:[%s1 + $0x18] sm:$0xf]
    %v24 = vld [vmem:[%s1 + $0x1c] sm:$0xf]
    %v25 = vld [vmem:[%s1 + $0x20] sm:$0xf]
    %v26 = vld [vmem:[%s1 + $0x24] sm:$0xf]
    %v27 = vld [vmem:[%s1 + $0x28] sm:$0xf]
    %v28 = vld [vmem:[%s1 + $0x2c] sm:$0xf]
    %v29 = vld [vmem:[%s1 + $0x30] sm:$0xf]
    %v30 = vld [vmem:[%s1 + $0x34] sm:$0xf]
    %v31 = vld [vmem:[%s1 + $0x38] sm:$0xf]
    %v32 = vld [vmem:[%s1 + $0x3c] sm:$0xf]
    %v49 = vunpack.c.l.b16 %v17
    %v50 = vunpack.c.l.b16 %v18
    %v51 = vunpack.c.l.b16 %v19
    %v52 = vunpack.c.l.b16 %v20
    %v53 = vunpack.c.l.b16 %v21
    %v54 = vunpack.c.l.b16 %v22
    %v55 = vunpack.c.l.b16 %v23
    %v56 = vunpack.c.l.b16 %v24
    %v57 = vunpack.c.l.b16 %v25
    %v58 = vunpack.c.l.b16 %v26
    %v59 = vunpack.c.l.b16 %v27
    %v60 = vunpack.c.l.b16 %v28
    %v61 = vunpack.c.l.b16 %v29
    %v62 = vunpack.c.l.b16 %v30
    %v63 = vunpack.c.l.b16 %v31
    %v64 = vunpack.c.l.b16 %v32
    %v65 = vpack.c.b16 %v50, %v49
    %v66 = vpack.c.b16 %v52, %v51
    %v67 = vpack.c.b16 %v54, %v53
    %v68 = vpack.c.b16 %v56, %v55
    %v69 = vpack.c.b16 %v58, %v57
    %v70 = vpack.c.b16 %v60, %v59
    %v71 = vpack.c.b16 %v62, %v61
    %v72 = vpack.c.b16 %v64, %v63
    %vm73 = vcmask 261120
    %v75 = vsel %vm73, %v16, 0
    %v78 = vsel %vm73, %v65, 0
    %v81 = vsel %vm73, %v66, 0
    %v84 = vsel %vm73, %v67, 0
    %v87 = vsel %vm73, %v68, 0
    %v90 = vsel %vm73, %v69, 0
    %v93 = vsel %vm73, %v70, 0
    %v96 = vsel %vm73, %v71, 0
    %v99 = vsel %vm73, %v72, 0
    %101 = vmatprep.subr.bf16.mxu0 0
    %102 = vmatpush1.bf16.xpose.msra.mxu0 %v99
    %103 = vmatprep.subr.bf16.mxu0 0
    %104 = vmatpush1.bf16.xpose.msra.mxu0 %v96
    %105 = vmatprep.subr.bf16.mxu0 0
    %106 = vmatpush1.bf16.xpose.msra.mxu0 %v93
    %107 = vmatprep.subr.bf16.mxu0 0
    %108 = vmatpush1.bf16.xpose.msra.mxu0 %v90
    %109 = vmatprep.subr.bf16.mxu0 0
    %110 = vmatpush1.bf16.xpose.msra.mxu0 %v87
    %111 = vmatprep.subr.bf16.mxu0 0
    %112 = vmatpush1.bf16.xpose.msra.mxu0 %v84
    %113 = vmatprep.subr.bf16.mxu0 0
    %114 = vmatpush1.bf16.xpose.msra.mxu0 %v81
    %115 = vmatprep.subr.bf16.mxu0 0
    %116 = vmatpush1.bf16.xpose.msra.mxu0 %v78
    %117 = vmatprep.subr.bf16.mxu0 0
    %118 = vmatpush2.bf16.xpose.msra.mxu0 0
    %119 = vmatprep.subr.bf16.mxu0 0
    %120 = vmatpush2.bf16.xpose.msra.mxu0 0
    %121 = vmatprep.subr.bf16.mxu0 0
    %122 = vmatpush2.bf16.xpose.msra.mxu0 0
    %123 = vmatprep.subr.bf16.mxu0 0
    %124 = vmatpush2.bf16.xpose.msra.mxu0 0
    %125 = vmatprep.subr.bf16.mxu0 0
    %126 = vmatpush2.bf16.xpose.msra.mxu0 0
    %127 = vmatprep.subr.bf16.mxu0 0
    %128 = vmatpush2.bf16.xpose.msra.mxu0 0
    %129 = vmatprep.subr.bf16.mxu0 0
    %130 = vmatpush2.bf16.xpose.msra.mxu0 0
    %131 = vmatprep.subr.bf16.mxu0 0
    %132 = vmatpush2.bf16.xpose.msra.mxu0 0
    %133 = vmatprep.mubr.bf16.mxu0 0
    %134 = vmatmul.mubr.bf16.gmra.mxu0 %v75
    %v135 = vpop.f32.mrf.mxu0
    %v136 = vadd.f32 0.0, %v135
    %v137 = vpop.f32.mrf.mxu0
    %v138 = vpop.f32.mrf.mxu0
    %v139 = vpop.f32.mrf.mxu0
    %140 = vdwg.mxu0
    %v141 = vmul.f32 %v136, %v136
    %v142 = vsub.f32 1.0, %v141
    %v143 = vmax.f32 %v142, 0.0
    %v144 = vadd.f32 %v143, 1e-07
    %v145 = vrsqrt.pop %v144
    %v146 = vmul.f32 %v144, %v145
    %vm147 = vcmp.eq.f32.partialorder %v144, inf
    %v148 = vsel %vm147, %v144, %v146
    %vm149 = vcmp.eq.f32.partialorder %v144, 0.0
    %v150 = vand.u32 %v144, 2147483648
    %v151 = vsel %vm149, %v150, %v148
    %v152 = vmul.f32 %v136, 0.87758255
    %v153 = vmul.f32 %v151, 0.47942555
    %v154 = vsub.f32 %v152, %v153
    %vm155 = vcmp.gt.f32.partialorder %v136, -0.87758255
    %v156 = vsub.f32 %v136, 0.23971277
    %v157 = vsel %vm155, %v154, %v156
    %v158 = vlaneseq
    %v159 = vand.u32 %v158, 127
    %s160 = smul.u32 0, 128
    %v161 = vstv %s160
    %v162 = vadd.s32 %v159, %v161
    %v163 = vld [vmem:[%s2] sm:$0xff]
    %164 = vset.pattern.permute.xlu0 0
    %165 = vperm.xlu0 %164, %v163
    %v166 = vpop.permute.xlu0 %165
    %vm167 = vcmp.eq.s32.totalorder %v162, %v166
    %v168 = vsel %vm167, %v157, %v136
    %v169 = vmul.f32 %v168, 30.0
    %170 = vst [vmem:[#allocation2] sm:$0xff] %v169
    // Predicated region
    $region14: #{tpu_custom_call.1} parent=1 // pred_check
      _
    $region15: #{tpu_custom_call.1} parent=1 // pred_check_branch
      %172 = sbr.rel (0) target = $region17
    $region16: #{tpu_custom_call.1} parent=1 // pred_region
      %s174 = ssub.s32 128, 128
      %175 = vsyncadd [#allocation3], %s174
      %s177 = sshll.u32 [#allocation2], 4
      %s178 = int_to_ptr.vmem [resolvable:$true] %s177
      %180 = dma.vmem_to_hbm [thread:$0]  %s178, 128, %s3, [#allocation3]
    $region17: #{tpu_custom_call.1} parent=1 // pred_fallthru
      _
    // Predicated region
    $region18: #{tpu_custom_call.1} parent=1 // pred_check
      _
    $region19: #{tpu_custom_call.1} parent=1 // pred_check_branch
      %182 = sbr.rel (0) target = $region21
    $region20: #{tpu_custom_call.1} parent=1 // pred_region
      %183 = dma.done [#allocation3], 128
    $region21: #{tpu_custom_call.1} parent=1 // pred_fallthru
      _
    %184 = vsyncpa [#allocation3], 1

</llo_original>
